<compile_context>
chip_gen: v7x
topology: tpu7x:2x2x1
jax: 0.10.0
libtpu: 0.0.40
codegen_flags: <defaults>
</compile_context>

<pallas_src>
import functools

import jax
import jax.numpy as jnp
from jax.experimental import pallas as pl
from jax.experimental.pallas import tpu as pltpu


# ---------------- shared conv stack + streamed max-pool kernel ---------------
def _conv_pool_kernel(xc_ref, w1_ref, w2_ref, w3_ref, o_ref, *, final_relu):
    """conv1->conv2->conv3 (k=1 convs as matmuls, BN folded) + running max over
    the points axis.  Grid = (batch, points-tiles); the output block (1,1,1024)
    is the per-batch max accumulator (resident across the "arbitrary" axis)."""
    lt = pl.program_id(1)

    @pl.when(lt == 0)
    def _init():
        o_ref[...] = jnp.full(o_ref.shape, -jnp.inf, dtype=o_ref.dtype)

    xc = xc_ref[0]                                            # (tl, n+ne) bf16
    h = jnp.dot(xc, w1_ref[0], preferred_element_type=jnp.float32)
    h = jnp.maximum(h, 0.0)
    h = jnp.dot(h.astype(jnp.bfloat16), w2_ref[...],
                preferred_element_type=jnp.float32)
    h = jnp.maximum(h, 0.0)
    h = jnp.dot(h.astype(jnp.bfloat16), w3_ref[...],
                preferred_element_type=jnp.float32)           # (tl, 1024)
    if final_relu:                                            # STN has bn3+ReLU
        h = jnp.maximum(h, 0.0)
    o_ref[...] = jnp.maximum(o_ref[...],
                             jnp.max(h, axis=0, keepdims=True)[None])


# ------------------------------ STN3d FC head --------------------------------
def _stn_head_kernel(g_ref, fw1_ref, fw2_ref, fw3_ref, fb3_ref, o_ref):
    g = g_ref[...].astype(jnp.bfloat16)                       # (B, 1024)
    g = jnp.dot(g, fw1_ref[...], preferred_element_type=jnp.float32)
    g = jnp.maximum(g, 0.0)
    g = jnp.dot(g.astype(jnp.bfloat16), fw2_ref[...],
                preferred_element_type=jnp.float32)
    g = jnp.maximum(g, 0.0)
    # fc3 bias has the identity matrix folded in
    g = jnp.dot(g.astype(jnp.bfloat16), fw3_ref[...],
                preferred_element_type=jnp.float32) + fb3_ref[...]
    o_ref[...] = g.astype(o_ref.dtype)                        # (B, n*n)


# --------------------------- classifier FC head ------------------------------
def _cls_head_kernel(g_ref, w1_ref, b1_ref, w2_ref, b2_ref, w3_ref, b3_ref,
                     o_ref):
    g = g_ref[...].astype(jnp.bfloat16)                       # (B, 1024)
    g = jnp.dot(g, w1_ref[...], preferred_element_type=jnp.float32) + b1_ref[...]
    g = jnp.maximum(g, 0.0)
    g = jnp.dot(g.astype(jnp.bfloat16), w2_ref[...],
                preferred_element_type=jnp.float32) + b2_ref[...]
    g = jnp.maximum(g, 0.0)
    logits = jnp.dot(g.astype(jnp.bfloat16), w3_ref[...],
                     preferred_element_type=jnp.float32) + b3_ref[...]
    # F.log_softmax(x, dim=0): over the BATCH axis, exactly as in the spec.
    m = jnp.max(logits, axis=0, keepdims=True)
    lse = m + jnp.log(jnp.sum(jnp.exp(logits - m), axis=0, keepdims=True))
    o_ref[...] = (logits - lse).astype(o_ref.dtype)           # (B, k)


# ------------------------------ tiling helpers -------------------------------
def _round_up(x, m):
    return (x + m - 1) // m * m


def _vmem_budgets():
    """Returns (per-step activation budget, vmem_limit_bytes), generation-aware."""
    kind = ""
    try:
        kind = jax.devices()[0].device_kind.lower()
    except Exception:
        pass
    if any(t in kind for t in ("v4", "v5", "v6")):   # 128 MiB VMEM per core
        return 20 * 2**20, 64 * 2**20
    return 10 * 2**20, 40 * 2**20                    # v7x / unknown: 64 MiB


def _choose_point_tile(L, tile_budget_bytes):
    """Largest VMEM-safe points tile; balanced tiles so padding is <16 rows/tile."""
    # Per-row VMEM estimate: f32 conv1/2/3 activations + bf16 re-casts +
    # double-buffered, 128-lane-padded bf16 input rows.
    row_bytes = (64 + 128 + 1024) * 4 + (64 + 128) * 2 + 2 * 128 * 2
    max_tl = max(256, tile_budget_bytes // row_bytes // 256 * 256)
    num_lt = -(-L // max_tl)                         # ceil
    tl = _round_up(-(-L // num_lt), 16)              # bf16 sublane alignment
    return tl, tl * num_lt, num_lt


def _full_spec(shape):
    nd = len(shape)
    return pl.BlockSpec(shape, lambda i, _nd=nd: (0,) * _nd)


# --------------------------------- wrapper -----------------------------------
def pointnet_cls_forward(x_ncl, c_ncl, params, *, n, k):
    """x_ncl: (B, n, L); c_ncl: (B, n_ensemble, L) -- PyTorch Conv1d layout."""
    B, _, L = x_ncl.shape
    ne = c_ncl.shape[1]
    nc = n + ne

    tile_budget, vmem_limit = _vmem_budgets()
    tl, L_pad, num_lt = _choose_point_tile(L, tile_budget)

    # One channels-last bf16 stream feeds both conv stacks (a single 24-wide
    # block instead of separate lane-sparse 4- and 20-wide blocks).
    xc = jnp.transpose(jnp.concatenate([x_ncl, c_ncl], axis=1), (0, 2, 1))
    xc = xc.astype(jnp.bfloat16)                               # (B, L, n+ne)
    if L_pad != L:
        # Edge padding duplicates the last point -> max-pool is unchanged and
        # no -inf masking is needed in the kernels.
        xc = jnp.pad(xc, ((0, 0), (0, L_pad - L), (0, 0)), mode="edge")

    bf = lambda a: a.astype(jnp.bfloat16)
    cparams_pool = pltpu.CompilerParams(
        dimension_semantics=("parallel", "arbitrary"),
        vmem_limit_bytes=vmem_limit)
    cparams_head = pltpu.CompilerParams(dimension_semantics=("arbitrary",))

    pool_out_shape = jax.ShapeDtypeStruct((B, 1, 1024), jnp.float32)
    pool_out_spec = pl.BlockSpec((1, 1, 1024), lambda b, lt: (b, 0, 0))
    xc_spec = pl.BlockSpec((1, tl, nc), lambda b, lt: (b, lt, 0))
    w2_spec = pl.BlockSpec((64, 128), lambda b, lt: (0, 0))
    w3_spec = pl.BlockSpec((128, 1024), lambda b, lt: (0, 0))

    # ---- STN3d conv stack + streamed max-pool ----
    # conv1 weight zero-padded over the c channels so the shared 24-wide stream
    # computes exactly conv1(x).
    stn_w1_full = jnp.concatenate(
        [params["stn_w1"], jnp.zeros((ne, 64), jnp.float32)], axis=0)[None]
    g1 = pl.pallas_call(
        functools.partial(_conv_pool_kernel, final_relu=True),
        out_shape=pool_out_shape,
        grid_spec=pltpu.PrefetchScalarGridSpec(
            num_scalar_prefetch=0,
            grid=(B, num_lt),
            in_specs=[xc_spec,
                      pl.BlockSpec((1, nc, 64), lambda b, lt: (0, 0, 0)),
                      w2_spec, w3_spec],
            out_specs=pool_out_spec),
        compiler_params=cparams_pool,
    )(xc, bf(stn_w1_full), bf(params["stn_w2"]), bf(params["stn_w3"]))
    g1 = g1.reshape(B, 1024)

    # ---- STN3d FC head (tiny, batched over B; identity folded into fc3 bias) --
    trans_flat = pl.pallas_call(
        _stn_head_kernel,
        out_shape=jax.ShapeDtypeStruct((B, n * n), jnp.float32),
        grid_spec=pltpu.PrefetchScalarGridSpec(
            num_scalar_prefetch=0,
            grid=(1,),
            in_specs=[_full_spec((B, 1024)),
                      _full_spec((1024, 512)),
                      _full_spec((512, 256)),
                      _full_spec((256, n * n)),
                      _full_spec((1, n * n))],
            out_specs=_full_spec((B, n * n))),
        compiler_params=cparams_head,
    )(g1, bf(params["stn_fw1"]), bf(params["stn_fw2"]),
      bf(params["stn_fw3"]), params["stn_fb3"])
    trans = trans_flat.reshape(B, n, n)

    # ---- fold torch.bmm(x^T, trans) into conv1's x-half:  xt@W1x == x@(T@W1x) --
    # TODO(synk): this tiny data-dependent weight fold (B*n*n*64 MACs) runs as
    #             plain JAX in the wrapper rather than inside a Pallas kernel.
    w1_eff = jnp.concatenate(
        [jnp.einsum("bij,jk->bik", trans, params["f_w1x"]),
         jnp.broadcast_to(params["f_w1c"][None], (B, ne, 64))], axis=1)

    # ---- PointNetfeat conv stack + streamed max-pool (bn3: no ReLU) ----
    g2 = pl.pallas_call(
        functools.partial(_conv_pool_kernel, final_relu=False),
        out_shape=pool_out_shape,
        grid_spec=pltpu.PrefetchScalarGridSpec(
            num_scalar_prefetch=0,
            grid=(B, num_lt),
            in_specs=[xc_spec,
                      pl.BlockSpec((1, nc, 64), lambda b, lt: (b, 0, 0)),
                      w2_spec, w3_spec],
            out_specs=pool_out_spec),
        compiler_params=cparams_pool,
    )(xc, bf(w1_eff), bf(params["f_w2"]), bf(params["f_w3"]))
    g2 = g2.reshape(B, 1024)

    # ---- classifier head + log_softmax over the batch axis (dim=0, per spec) --
    logp = pl.pallas_call(
        _cls_head_kernel,
        out_shape=jax.ShapeDtypeStruct((B, k), jnp.float32),
        grid_spec=pltpu.PrefetchScalarGridSpec(
            num_scalar_prefetch=0,
            grid=(1,),
            in_specs=[_full_spec((B, 1024)),
                      _full_spec((1024, 512)), _full_spec((1, 512)),
                      _full_spec((512, 256)), _full_spec((1, 256)),
                      _full_spec((256, k)), _full_spec((1, k))],
            out_specs=_full_spec((B, k))),
        compiler_params=cparams_head,
    )(g2, bf(params["c_w1"]), params["c_b1"], bf(params["c_w2"]),
      params["c_b2"], bf(params["c_w3"]), params["c_b3"])

    return logp, trans


# -------------------------------- parameters ---------------------------------
def make_params(key, *, n=4, n_ensemble=20, k=2):
    """Deterministic synthetic parameters with eval-mode BN folded in."""
    eps = 1e-5
    s = (1.0 + eps) ** -0.5          # BN eval: gamma=1, beta=0, mean=0, var=1
    keys = jax.random.split(key, 17)

    def rnd(k_, shape, scale=0.05):
        return jax.random.normal(k_, shape, dtype=jnp.float32) * scale

    p = {}
    # STN3d (conv1-3, fc1-2 bias-free, each followed by eval BN -> scale s)
    p["stn_w1"] = rnd(keys[0], (n, 64)) * s
    p["stn_w2"] = rnd(keys[1], (64, 128)) * s
    p["stn_w3"] = rnd(keys[2], (128, 1024)) * s
    p["stn_fw1"] = rnd(keys[3], (1024, 512)) * s
    p["stn_fw2"] = rnd(keys[4], (512, 256)) * s
    p["stn_fw3"] = rnd(keys[5], (256, n * n))
    p["stn_fb3"] = (rnd(keys[6], (n * n,)) +
                    jnp.eye(n, dtype=jnp.float32).ravel())[None, :]   # +identity
    # PointNetfeat (conv1 weight split into x-channel / c-channel halves)
    p["f_w1x"] = rnd(keys[7], (n, 64)) * s
    p["f_w1c"] = rnd(keys[8], (n_ensemble, 64)) * s
    p["f_w2"] = rnd(keys[9], (64, 128)) * s
    p["f_w3"] = rnd(keys[10], (128, 1024)) * s
    # classifier (fc1/fc2: bias + eval BN -> scale both; fc3: plain bias)
    p["c_w1"] = rnd(keys[11], (1024, 512)) * s
    p["c_b1"] = (rnd(keys[12], (512,)) * s)[None, :]
    p["c_w2"] = rnd(keys[13], (512, 256)) * s
    p["c_b2"] = (rnd(keys[14], (256,)) * s)[None, :]
    p["c_w3"] = rnd(keys[15], (256, k))
    p["c_b3"] = rnd(keys[16], (k,))[None, :]
    return p


# --------------------------- pure-JAX f32 reference --------------------------
def pointnet_cls_reference(x_ncl, c_ncl, p, *, n):
    relu = jax.nn.relu
    x = jnp.transpose(x_ncl, (0, 2, 1)).astype(jnp.float32)
    c = jnp.transpose(c_ncl, (0, 2, 1)).astype(jnp.float32)
    # STN3d
    h = relu(x @ p["stn_w1"]); h = relu(h @ p["stn_w2"]); h = relu(h @ p["stn_w3"])
    g = jnp.max(h, axis=1)
    g = relu(g @ p["stn_fw1"]); g = relu(g @ p["stn_fw2"])
    trans = (g @ p["stn_fw3"] + p["stn_fb3"]).reshape(-1, n, n)
    # PointNetfeat
    xt = jnp.einsum("bln,bnm->blm", x, trans)
    h = relu(xt @ p["f_w1x"] + c @ p["f_w1c"])
    h = relu(h @ p["f_w2"])
    h = h @ p["f_w3"]
    gf = jnp.max(h, axis=1)
    # classifier
    y = relu(gf @ p["c_w1"] + p["c_b1"])
    y = relu(y @ p["c_w2"] + p["c_b2"])
    logits = y @ p["c_w3"] + p["c_b3"]
    return jax.nn.log_softmax(logits, axis=0), trans


if __name__ == "__main__":
    B, n, n_ensemble, k = 2, 4, 20, 2
    key = jax.random.PRNGKey(0)
    kx, kc, kp = jax.random.split(key, 3)
    params = make_params(kp, n=n, n_ensemble=n_ensemble, k=k)

    for L in (16, 19):   # L=19 exercises the edge-padding (L % tile != 0) path
        x = jax.random.normal(jax.random.fold_in(kx, L), (B, n, L),
                              dtype=jnp.float32)
        c = jax.random.normal(jax.random.fold_in(kc, L), (B, n_ensemble, L),
                              dtype=jnp.float32)

        logp, trans = pointnet_cls_forward(x, c, params, n=n, k=k)
        logp = jax.block_until_ready(logp)
        trans = jax.block_until_ready(trans)

        ref_logp, ref_trans = pointnet_cls_reference(x, c, params, n=n)
        assert logp.shape == (B, k) and trans.shape == (B, n, n)
        # bf16 MXU operands vs f32 reference -> relaxed tolerance
        assert jnp.allclose(trans, ref_trans, atol=2e-2, rtol=2e-2), \
            f"trans mismatch (L={L})"
        assert jnp.allclose(logp, ref_logp, atol=2e-2, rtol=2e-2), \
            f"logp mismatch (L={L})"

    print("KERNEL_OK")
</pallas_src>

<mosaic_0001>
module attributes {stable_mosaic.version = 11 : i64} {
  func.func @_conv_pool_kernel(%arg0: i32, %arg1: i32, %arg2: memref<1x16x24xbf16, #tpu.memory_space<vmem>>, %arg3: memref<1x24x64xbf16, #tpu.memory_space<vmem>>, %arg4: memref<64x128xbf16, #tpu.memory_space<vmem>>, %arg5: memref<128x1024xbf16, #tpu.memory_space<vmem>>, %arg6: memref<1x1x1024xf32, #tpu.memory_space<vmem>>) attributes {dimension_semantics = [#tpu.dimension_semantics<parallel>, #tpu.dimension_semantics<arbitrary>], iteration_bounds = array<i64: 2, 1>, scalar_prefetch = 0 : i64, scratch_operands = 0 : i64, tpu.core_type = #tpu.core_type<tc>, window_params = [{transform_indices = @transform_0, window_bounds = array<i64: 1, 16, 24>}, {pipeline_mode = #tpu.pipeline_mode<synchronous>, transform_indices = @transform_1, window_bounds = array<i64: 1, 24, 64>}, {pipeline_mode = #tpu.pipeline_mode<synchronous>, transform_indices = @transform_2, window_bounds = array<i64: 64, 128>}, {pipeline_mode = #tpu.pipeline_mode<synchronous>, transform_indices = @transform_3, window_bounds = array<i64: 128, 1024>}, {transform_indices = @transform_4, window_bounds = array<i64: 1, 1, 1024>}]} {
    %c0_i32 = arith.constant 0 : i32
    %0 = arith.cmpi eq, %arg1, %c0_i32 : i32
    %1 = arith.extui %0 : i1 to i32
    %c0_i32_0 = arith.constant 0 : i32
    %2 = arith.cmpi ne, %1, %c0_i32_0 : i32
    scf.if %2 {
      %cst_22 = arith.constant 0xFF800000 : f32
      %26 = vector.broadcast %cst_22 : f32 to vector<1x1x1024xf32>
      %c0_23 = arith.constant 0 : index
      %c0_24 = arith.constant 0 : index
      %c0_25 = arith.constant 0 : index
      %27 = vector.load %arg6[%c0_23, %c0_24, %c0_25] : memref<1x1x1024xf32, #tpu.memory_space<vmem>>, vector<1x1x1024xf32>
      tpu.vector_store %arg6[%c0_23, %c0_24, %c0_25], %26 {strides = array<i32>} : memref<1x1x1024xf32, #tpu.memory_space<vmem>>, vector<1x1x1024xf32>,
    } else {
    }
    %c0 = arith.constant 0 : index
    %c0_1 = arith.constant 0 : index
    %c0_2 = arith.constant 0 : index
    %3 = vector.load %arg2[%c0, %c0_1, %c0_2] : memref<1x16x24xbf16, #tpu.memory_space<vmem>>, vector<1x16x24xbf16>
    %4 = vector.shape_cast %3 : vector<1x16x24xbf16> to vector<16x24xbf16>
    %c0_3 = arith.constant 0 : index
    %c0_4 = arith.constant 0 : index
    %c0_5 = arith.constant 0 : index
    %5 = vector.load %arg3[%c0_3, %c0_4, %c0_5] : memref<1x24x64xbf16, #tpu.memory_space<vmem>>, vector<1x24x64xbf16>
    %6 = vector.shape_cast %5 : vector<1x24x64xbf16> to vector<24x64xbf16>
    %cst = arith.constant dense<0.000000e+00> : vector<16x64xf32>
    %7 = tpu.matmul %4, %6, %cst {dimension_numbers = #tpu.dot_dimension_numbers<[1], [0], [0], [1], [0, 0, 1, 1], [], []>} : vector<16x24xbf16>, vector<24x64xbf16>, vector<16x64xf32> -> vector<16x64xf32>
    %cst_6 = arith.constant 0.000000e+00 : f32
    %8 = vector.broadcast %cst_6 : f32 to vector<16x64xf32>
    %9 = arith.maximumf %7, %8 : vector<16x64xf32>
    %10 = arith.truncf %9 : vector<16x64xf32> to vector<16x64xbf16>
    %c0_7 = arith.constant 0 : index
    %c0_8 = arith.constant 0 : index
    %11 = vector.load %arg4[%c0_7, %c0_8] : memref<64x128xbf16, #tpu.memory_space<vmem>>, vector<64x128xbf16>
    %cst_9 = arith.constant dense<0.000000e+00> : vector<16x128xf32>
    %12 = tpu.matmul %10, %11, %cst_9 {dimension_numbers = #tpu.dot_dimension_numbers<[1], [0], [0], [1], [0, 0, 1, 1], [], []>} : vector<16x64xbf16>, vector<64x128xbf16>, vector<16x128xf32> -> vector<16x128xf32>
    %cst_10 = arith.constant 0.000000e+00 : f32
    %13 = vector.broadcast %cst_10 : f32 to vector<16x128xf32>
    %14 = arith.maximumf %12, %13 : vector<16x128xf32>
    %15 = arith.truncf %14 : vector<16x128xf32> to vector<16x128xbf16>
    %c0_11 = arith.constant 0 : index
    %c0_12 = arith.constant 0 : index
    %16 = vector.load %arg5[%c0_11, %c0_12] : memref<128x1024xbf16, #tpu.memory_space<vmem>>, vector<128x1024xbf16>
    %cst_13 = arith.constant dense<0.000000e+00> : vector<16x1024xf32>
    %17 = tpu.matmul %15, %16, %cst_13 {dimension_numbers = #tpu.dot_dimension_numbers<[1], [0], [0], [1], [0, 0, 1, 1], [], []>} : vector<16x128xbf16>, vector<128x1024xbf16>, vector<16x1024xf32> -> vector<16x1024xf32>
    %cst_14 = arith.constant 0.000000e+00 : f32
    %18 = vector.broadcast %cst_14 : f32 to vector<16x1024xf32>
    %19 = arith.maximumf %17, %18 : vector<16x1024xf32>
    %c0_15 = arith.constant 0 : index
    %c0_16 = arith.constant 0 : index
    %c0_17 = arith.constant 0 : index
    %20 = vector.load %arg6[%c0_15, %c0_16, %c0_17] : memref<1x1x1024xf32, #tpu.memory_space<vmem>>, vector<1x1x1024xf32>
    %cst_18 = arith.constant dense<0xFF800000> : vector<1024xf32>
    %21 = vector.multi_reduction <maximumf>, %19, %cst_18 [0] : vector<16x1024xf32> to vector<1024xf32>
    %22 = vector.shape_cast %21 : vector<1024xf32> to vector<1x1024xf32>
    %23 = vector.shape_cast %22 : vector<1x1024xf32> to vector<1x1x1024xf32>
    %24 = arith.maximumf %20, %23 : vector<1x1x1024xf32>
    %c0_19 = arith.constant 0 : index
    %c0_20 = arith.constant 0 : index
    %c0_21 = arith.constant 0 : index
    %25 = vector.load %arg6[%c0_19, %c0_20, %c0_21] : memref<1x1x1024xf32, #tpu.memory_space<vmem>>, vector<1x1x1024xf32>
    tpu.vector_store %arg6[%c0_19, %c0_20, %c0_21], %24 {strides = array<i32>} : memref<1x1x1024xf32, #tpu.memory_space<vmem>>, vector<1x1x1024xf32>,
    return
  }
  func.func @transform_0(%arg0: i32, %arg1: i32) -> (i32, i32, i32) {
    %c0_i32 = arith.constant 0 : i32
    %c0_i32_0 = arith.constant 0 : i32
    return %arg0, %arg1, %c0_i32 : i32, i32, i32
  }
  func.func @transform_1(%arg0: i32, %arg1: i32) -> (i32, i32, i32) {
    %c0_i32 = arith.constant 0 : i32
    %c0_i32_0 = arith.constant 0 : i32
    %c0_i32_1 = arith.constant 0 : i32
    %c0_i32_2 = arith.constant 0 : i32
    return %c0_i32, %c0_i32_0, %c0_i32_1 : i32, i32, i32
  }
  func.func @transform_2(%arg0: i32, %arg1: i32) -> (i32, i32) {
    %c0_i32 = arith.constant 0 : i32
    %c0_i32_0 = arith.constant 0 : i32
    %c0_i32_1 = arith.constant 0 : i32
    return %c0_i32, %c0_i32_0 : i32, i32
  }
  func.func @transform_3(%arg0: i32, %arg1: i32) -> (i32, i32) {
    %c0_i32 = arith.constant 0 : i32
    %c0_i32_0 = arith.constant 0 : i32
    %c0_i32_1 = arith.constant 0 : i32
    return %c0_i32, %c0_i32_0 : i32, i32
  }
  func.func @transform_4(%arg0: i32, %arg1: i32) -> (i32, i32, i32) {
    %c0_i32 = arith.constant 0 : i32
    %c0_i32_0 = arith.constant 0 : i32
    %c0_i32_1 = arith.constant 0 : i32
    return %arg0, %c0_i32, %c0_i32_0 : i32, i32, i32
  }
}

</mosaic_0001>

<llo_original>
// kernel: tpu_custom_call.1
$region0: #{tpu_custom_call.1}
  #allocation0 [shape = 'u32[]', space=smem, size = 0x4, offset = 0x4, fixed_abs, tag = 'smem constant byte address 0x4 - core index']
  #allocation1 [shape = 'u32[144,128]{1,0:T(1,128)}', space=vmem, size = 0x12000, scoped, tag = 'internal scratch']
  %s0 = inlined_call_operand.hbm [shape: bf16[2,16,24], index: 0, kind: input, shape index: {}]
  %s1 = inlined_call_operand.hbm [shape: bf16[1,24,64], index: 1, kind: input, shape index: {}]
  %s2 = inlined_call_operand.hbm [shape: bf16[64,128], index: 2, kind: input, shape index: {}]
  %s3 = inlined_call_operand.hbm [shape: bf16[128,1024], index: 3, kind: input, shape index: {}]
  %s4 = inlined_call_operand.hbm [shape: f32[2,1,1024], index: 4, kind: output, shape index: {}]
  %s5 = sld [smem:[#allocation0]]
  $region69: #{tpu_custom_call.1} parent=0
    _
  %s7 = ssub.s32 1, %s5
  %s8 = scalar_select 0, %s7, %s5
  $region1: #{tpu_custom_call.1} parent=0
    #allocation2 [shape = 'u8[8192]{0}', space=vmem, size = 0x2000, scoped, tag = 'input window, operand 0']
    #allocation3 [shape = 's32[2]{0}', space=sflag, size = 0x8, scoped, tag = 'scoped memory for tpu_custom_call.1']
    #allocation4 [shape = 's32[2]{0}', space=sflag, size = 0x8, scoped, tag = 'scoped memory for tpu_custom_call.1']
    #allocation5 [shape = 'u8[6144]{0}', space=vmem, size = 0x1800, scoped, tag = 'input window, operand 1, single buffered']
    #allocation6 [shape = 's32[1]{0}', space=sflag, size = 0x4, scoped, tag = 'scoped memory for tpu_custom_call.1']
    #allocation7 [shape = 'u8[16384]{0}', space=vmem, size = 0x4000, scoped, tag = 'input window, operand 2, single buffered']
    #allocation8 [shape = 'u8[262144]{0}', space=vmem, size = 0x40000, scoped, tag = 'input window, operand 3, single buffered']
    #allocation9 [shape = 's32[1]{0}', space=sflag, size = 0x4, scoped, tag = 'scoped memory for tpu_custom_call.1']
    #allocation10 [shape = 'u8[8192]{0}', space=vmem, size = 0x2000, scoped, tag = 'output window, operand 0']
    %9 = vsyncpa [#allocation3], 0
    %s10 = scalar_lea.sflag [#allocation3], 1
    %11 = vsyncpa %s10, 0
    %12 = vsyncpa [#allocation6], 0
    %13 = vsyncpa [#allocation9], 0
    %14 = vsyncpa [#allocation4], 0
    %s15 = scalar_lea.sflag [#allocation4], 1
    %16 = vsyncpa %s15, 0
    loop: start=0, step=1, limit=4
    $region2: #{tpu_custom_call.1} parent=1 // loop_pre_header
      _
    $region3: #{tpu_custom_call.1} parent=1 // loop_header
      %s18 = sphi 0, %s22
      %p19 = scmp.ge.s32.totalorder %s18, 4
      %s25 = sphi 0, %s37
      %s26 = sphi 0, %s33
      %s27 = sphi 0, %s25
      %s28 = sphi 0, %s26
      %s29 = sphi 0, %s27
      %s30 = sphi 0, %s28
      %s42 = sphi 0, %s44
      %s45 = sphi 0, %s42
      %s46 = sphi 0, %s45
      %s62 = sphi 0, %s46
      %s66 = sphi 0, %s66
      %s68 = sphi 0, %s66
      %s69 = sphi 0, %s68
      %s83 = sphi 0, %s69
      %s87 = sphi 0, %s87
      %s89 = sphi 0, %s87
      %s90 = sphi 0, %s89
      %s104 = sphi 0, %s90
      %s108 = sphi 0, %s108
      %s110 = sphi 0, %s108
      %s111 = sphi 0, %s110
      %s125 = sphi 0, %s111
      %s131 = sphi 0, %s133
      %s134 = sphi 0, %s131
      %s135 = sphi 0, %s134
      %s151 = sphi 0, %s135
    $region4: #{tpu_custom_call.1} parent=1 // loop_header_branch
      %21 = sbr.rel (%p19) target = $region8
    $region5: #{tpu_custom_call.1} parent=1 // loop_body
      %s23 = ssub.s32 %s18, 1
      %s24 = ssub.s32 %s18, 2
      %s31 = sadd.s32 1, %s26
      %p32 = scmp.ge.s32.totalorder %s31, 1
      %s33 = scalar_select %p32, 0, %s31
      %s34 = sadd.s32 1, %s25
      %s35 = scalar_select %p32, %s34, %s25
      %p36 = scmp.ge.s32.totalorder %s35, 2
      %s37 = scalar_select %p36, 0, %s35
      %s38 = ssub.s32 %s25, %s37
      %s39 = ssub.s32 %s26, %s33
      %s40 = sor.u32 %s38, %s39
      %p41 = scmp.eq.s32.totalorder %s40, 0
      %s43 = sadd.s32 %s42, 1
      %s44 = scalar_select %p41, %s42, %s43
      %p47 = pneg %p41
      %p48 = scmp.eq.s32.totalorder %s18, 1
      %p49 = por %p47, %p48
      %p50 = scmp.ne.s32.totalorder %s42, %s45
      %p51 = scmp.eq.s32.totalorder %s18, 0
      %p52 = por %p50, %p51
      %p53 = scmp.ne.s32.totalorder %s42, %s45
      %p54 = scmp.eq.s32.totalorder %s23, 1
      %p55 = por %p53, %p54
      %p56 = scmp.ne.s32.totalorder %s45, %s46
      %p57 = scmp.eq.s32.totalorder %s23, 0
      %p58 = por %p56, %p57
      %p59 = scmp.ne.s32.totalorder %s45, %s46
      %p60 = scmp.eq.s32.totalorder %s24, 1
      %p61 = por %p59, %p60
      %p63 = scmp.ne.s32.totalorder %s46, %s62
      %p64 = scmp.eq.s32.totalorder %s24, 0
      %p65 = por %p63, %p64
      %s67 = sadd.s32 %s66, 1
      %p70 = scmp.eq.s32.totalorder %s18, 1
      %p71 = scmp.ne.s32.totalorder %s66, %s68
      %p72 = scmp.eq.s32.totalorder %s18, 0
      %p73 = por %p71, %p72
      %p74 = scmp.ne.s32.totalorder %s66, %s68
      %p75 = scmp.eq.s32.totalorder %s23, 1
      %p76 = por %p74, %p75
      %p77 = scmp.ne.s32.totalorder %s68, %s69
      %p78 = scmp.eq.s32.totalorder %s23, 0
      %p79 = por %p77, %p78
      %p80 = scmp.ne.s32.totalorder %s68, %s69
      %p81 = scmp.eq.s32.totalorder %s24, 1
      %p82 = por %p80, %p81
      %p84 = scmp.ne.s32.totalorder %s69, %s83
      %p85 = scmp.eq.s32.totalorder %s24, 0
      %p86 = por %p84, %p85
      %s88 = sadd.s32 %s87, 1
      %p91 = scmp.eq.s32.totalorder %s18, 1
      %p92 = scmp.ne.s32.totalorder %s87, %s89
      %p93 = scmp.eq.s32.totalorder %s18, 0
      %p94 = por %p92, %p93
      %p95 = scmp.ne.s32.totalorder %s87, %s89
      %p96 = scmp.eq.s32.totalorder %s23, 1
      %p97 = por %p95, %p96
      %p98 = scmp.ne.s32.totalorder %s89, %s90
      %p99 = scmp.eq.s32.totalorder %s23, 0
      %p100 = por %p98, %p99
      %p101 = scmp.ne.s32.totalorder %s89, %s90
      %p102 = scmp.eq.s32.totalorder %s24, 1
      %p103 = por %p101, %p102
      %p105 = scmp.ne.s32.totalorder %s90, %s104
      %p106 = scmp.eq.s32.totalorder %s24, 0
      %p107 = por %p105, %p106
      %s109 = sadd.s32 %s108, 1
      %p112 = scmp.eq.s32.totalorder %s18, 1
      %p113 = scmp.ne.s32.totalorder %s108, %s110
      %p114 = scmp.eq.s32.totalorder %s18, 0
      %p115 = por %p113, %p114
      %p116 = scmp.ne.s32.totalorder %s108, %s110
      %p117 = scmp.eq.s32.totalorder %s23, 1
      %p118 = por %p116, %p117
      %p119 = scmp.ne.s32.totalorder %s110, %s111
      %p120 = scmp.eq.s32.totalorder %s23, 0
      %p121 = por %p119, %p120
      %p122 = scmp.ne.s32.totalorder %s110, %s111
      %p123 = scmp.eq.s32.totalorder %s24, 1
      %p124 = por %p122, %p123
      %p126 = scmp.ne.s32.totalorder %s111, %s125
      %p127 = scmp.eq.s32.totalorder %s24, 0
      %p128 = por %p126, %p127
      %s129 = ssub.s32 %s25, %s37
      %p130 = scmp.eq.s32.totalorder %s129, 0
      %s132 = sadd.s32 %s131, 1
      %s133 = scalar_select %p130, %s131, %s132
      %p136 = pneg %p130
      %p137 = scmp.eq.s32.totalorder %s18, 1
      %p138 = por %p136, %p137
      %p139 = scmp.ne.s32.totalorder %s131, %s134
      %p140 = scmp.eq.s32.totalorder %s18, 0
      %p141 = por %p139, %p140
      %p142 = scmp.ne.s32.totalorder %s131, %s134
      %p143 = scmp.eq.s32.totalorder %s23, 1
      %p144 = por %p142, %p143
      %p145 = scmp.ne.s32.totalorder %s134, %s135
      %p146 = scmp.eq.s32.totalorder %s23, 0
      %p147 = por %p145, %p146
      %p148 = scmp.ne.s32.totalorder %s134, %s135
      %p149 = scmp.eq.s32.totalorder %s24, 1
      %p150 = por %p148, %p149
      %p152 = scmp.ne.s32.totalorder %s135, %s151
      %p153 = scmp.eq.s32.totalorder %s24, 0
      %p154 = por %p152, %p153
      %p155 = scmp.le.s32.totalorder 1, %s18
      %p156 = scmp.lt.s32.totalorder %s18, 3
      %p157 = pnand %p155, %p156
      %p158 = pneg %p157
      // Predicated region
      $region9: #{tpu_custom_call.1} parent=5 // pred_check
        _
      $region10: #{tpu_custom_call.1} parent=5 // pred_check_branch
        %160 = sbr.rel (%p157) target = $region12
      $region11: #{tpu_custom_call.1} parent=5 // pred_region
        %s161 = ssub.s32 %s18, 1
        // Predicated region
        $region13: #{tpu_custom_call.1} parent=11 // pred_check
          %p162 = pneg %p79
        $region14: #{tpu_custom_call.1} parent=11 // pred_check_branch
          %164 = sbr.rel (%p162) target = $region16
        $region15: #{tpu_custom_call.1} parent=11 // pred_region
          %s166 = ssub.s32 192, 192
          %167 = vsyncadd [#allocation6], %s166
          %s168 = sshll.u32 [#allocation5], 4
          %s169 = int_to_ptr.vmem [resolvable:$true] %s168
          %174 = dma.hbm_to_vmem [thread:$0]  %s1, 192, %s169, [#allocation6], 64, 64, 4
        $region16: #{tpu_custom_call.1} parent=11 // pred_fallthru
          _
        // Predicated region
        $region17: #{tpu_custom_call.1} parent=11 // pred_check
          %p175 = pneg %p100
        $region18: #{tpu_custom_call.1} parent=11 // pred_check_branch
          %177 = sbr.rel (%p175) target = $region20
        $region19: #{tpu_custom_call.1} parent=11 // pred_region
          %s179 = ssub.s32 512, 512
          %180 = vsyncadd [#allocation6], %s179
          %s181 = sshll.u32 [#allocation7], 4
          %s182 = int_to_ptr.vmem [resolvable:$true] %s181
          %187 = dma.hbm_to_vmem [thread:$0]  %s2, 512, %s182, [#allocation6], 64, 64, 4
        $region20: #{tpu_custom_call.1} parent=11 // pred_fallthru
          _
        // Predicated region
        $region21: #{tpu_custom_call.1} parent=11 // pred_check
          %p188 = pneg %p121
        $region22: #{tpu_custom_call.1} parent=11 // pred_check_branch
          %190 = sbr.rel (%p188) target = $region24
        $region23: #{tpu_custom_call.1} parent=11 // pred_region
          %s192 = ssub.s32 8192, 8192
          %193 = vsyncadd [#allocation9], %s192
          %s194 = sshll.u32 [#allocation8], 4
          %s195 = int_to_ptr.vmem [resolvable:$true] %s194
          %200 = dma.hbm_to_vmem [thread:$0]  %s3, 8192, %s195, [#allocation9], 512, 512, 32
        $region24: #{tpu_custom_call.1} parent=11 // pred_fallthru
          _
      $region12: #{tpu_custom_call.1} parent=5 // pred_fallthru
        _
      %p201 = scmp.lt.s32.totalorder %s18, 2
      // Predicated region
      $region25: #{tpu_custom_call.1} parent=5 // pred_check
        %p202 = pneg %p201
      $region26: #{tpu_custom_call.1} parent=5 // pred_check_branch
        %204 = sbr.rel (%p202) target = $region28
      $region27: #{tpu_custom_call.1} parent=5 // pred_region
        // Predicated region
        $region29: #{tpu_custom_call.1} parent=27 // pred_check
          %p205 = pneg %p52
        $region30: #{tpu_custom_call.1} parent=27 // pred_check_branch
          %207 = sbr.rel (%p205) target = $region32
        $region31: #{tpu_custom_call.1} parent=27 // pred_region
          %s208 = sand.u32 %s42, 1
          %s209 = scalar_lea.sflag [#allocation3], %s208
          %s210 = sand.u32 %s42, 1
          %s211 = smul.addr %s210, 8
          %s212 = scalar_lea.vmem [#allocation2], %s211
          %s213 = smul.u32 2, %s26
          %s215 = ssub.s32 128, 128
          %216 = vsyncadd %s209, %s215
          %s217 = smul.addr %s25, 2
          %s218 = sadd.s32 %s213, %s217
          %s219 = smul.addr %s218, 64
          %s220 = scalar_lea.hbm %s0, %s219
          %s221 = sshll.u32 %s212, 4
          %s222 = int_to_ptr.vmem [resolvable:$true] %s221
          %227 = dma.hbm_to_vmem [thread:$0]  %s220, 128, %s222, %s209, 64, 64, 4
        $region32: #{tpu_custom_call.1} parent=27 // pred_fallthru
          _
      $region28: #{tpu_custom_call.1} parent=5 // pred_fallthru
        _
      %p228 = scmp.le.s32.totalorder 1, %s18
      %p229 = scmp.lt.s32.totalorder %s18, 3
      %p230 = pnand %p228, %p229
      %p231 = pneg %p230
      // Predicated region
      $region33: #{tpu_custom_call.1} parent=5 // pred_check
        _
      $region34: #{tpu_custom_call.1} parent=5 // pred_check_branch
        %233 = sbr.rel (%p230) target = $region36
      $region35: #{tpu_custom_call.1} parent=5 // pred_region
        %s234 = ssub.s32 %s18, 1
        %s235 = sand.u32 %s45, 1
        %s236 = scalar_lea.sflag [#allocation3], %s235
        %s237 = sand.u32 %s45, 1
        %s238 = smul.addr %s237, 8
        %s239 = scalar_lea.vmem [#allocation2], %s238
        // Predicated region
        $region37: #{tpu_custom_call.1} parent=35 // pred_check
          %p240 = pneg %p58
        $region38: #{tpu_custom_call.1} parent=35 // pred_check_branch
          %242 = sbr.rel (%p240) target = $region40
        $region39: #{tpu_custom_call.1} parent=35 // pred_region
          %243 = dma.done %s236, 128
        $region40: #{tpu_custom_call.1} parent=35 // pred_fallthru
          _
        // Predicated region
        $region41: #{tpu_custom_call.1} parent=35 // pred_check
          %p244 = pneg %p79
        $region42: #{tpu_custom_call.1} parent=35 // pred_check_branch
          %246 = sbr.rel (%p244) target = $region44
        $region43: #{tpu_custom_call.1} parent=35 // pred_region
          %247 = dma.done [#allocation6], 192
        $region44: #{tpu_custom_call.1} parent=35 // pred_fallthru
          _
        // Predicated region
        $region45: #{tpu_custom_call.1} parent=35 // pred_check
          %p248 = pneg %p100
        $region46: #{tpu_custom_call.1} parent=35 // pred_check_branch
          %250 = sbr.rel (%p248) target = $region48
        $region47: #{tpu_custom_call.1} parent=35 // pred_region
          %251 = dma.done [#allocation6], 512
        $region48: #{tpu_custom_call.1} parent=35 // pred_fallthru
          _
        // Predicated region
        $region49: #{tpu_custom_call.1} parent=35 // pred_check
          %p252 = pneg %p121
        $region50: #{tpu_custom_call.1} parent=35 // pred_check_branch
          %254 = sbr.rel (%p252) target = $region52
        $region51: #{tpu_custom_call.1} parent=35 // pred_region
          %255 = dma.done [#allocation9], 8192
        $region52: #{tpu_custom_call.1} parent=35 // pred_fallthru
          _
        %s256 = sand.u32 %s45, 1
        %s257 = scalar_lea.sflag [#allocation3], %s256
        %s258 = sand.u32 %s45, 1
        %s259 = smul.addr %s258, 8
        %s260 = scalar_lea.vmem [#allocation2], %s259
        %p261 = pneg %p58
        %p262 = pneg %p55
        %p263 = pneg %p79
        %p264 = pneg %p76
        %p265 = pneg %p100
        %p266 = pneg %p97
        %p267 = pneg %p121
        %p268 = pneg %p118
        %p269 = pneg %p147
        %p270 = pneg %p144
        %s271 = sand.u32 %s134, 1
        %s272 = scalar_lea.sflag [#allocation4], %s271
        %s273 = sand.u32 %s134, 1
        %s274 = smul.addr %s273, 8
        %s275 = scalar_lea.vmem [#allocation10], %s274
        %s276 = smul.u32 2, %s28
        %p278 = scmp.eq.s32.totalorder %s28, 0
        // Predicated region
        $region53: #{tpu_custom_call.1} parent=35 // pred_check
          %p279 = pneg %p278
        $region54: #{tpu_custom_call.1} parent=35 // pred_check_branch
          %281 = sbr.rel (%p279) target = $region56
        $region55: #{tpu_custom_call.1} parent=35 // pred_region
          %282 = vst [vmem:[%s275] sm:$0xff] -inf
        $region56: #{tpu_custom_call.1} parent=35 // pred_fallthru
          _
        %v283 = vld [vmem:[%s239] sm:$0xf]
        %v284 = vld [vmem:[%s239 + $0x4] sm:$0xf]
        %v285 = vld [vmem:[#allocation5] sm:$0xf]
        %v286 = vld [vmem:[#allocation5 + $0x4] sm:$0xf]
        %v287 = vld [vmem:[#allocation5 + $0x8] sm:$0xf]
        %v290 = vunpack.c.l.b16 %v283
        %v291 = vunpack.c.l.b16 %v284
        %v292 = vpack.c.b16 %v291, %v290
        %v296 = vunpack.c.l.b16 %v285
        %v297 = vunpack.c.l.b16 %v286
        %v298 = vunpack.c.l.b16 %v287
        %v299 = vpack.c.b16 %v297, %v296
        %v300 = vpack.c.b16 %v298, %v298
        %vm302 = vcmask 195584
        %v304 = vsel %vm302, %v292, 0
        %vm306 = vcmask 1043456
        %v308 = vsel %vm306, %v300, 0
        %310 = vmatprep.subr.bf16.mxu0 0
        %311 = vmatpush1.bf16.msra.mxu0 %v299
        %312 = vmatprep.subr.bf16.mxu0 0
        %313 = vmatpush1.bf16.msra.mxu0 %v308
        %314 = vmatprep.subr.bf16.mxu0 0
        %315 = vmatpush1.bf16.msra.mxu0 0
        %316 = vmatprep.subr.bf16.mxu0 0
        %317 = vmatpush1.bf16.msra.mxu0 0
        %318 = vmatprep.subr.bf16.mxu0 0
        %319 = vmatpush1.bf16.msra.mxu0 0
        %320 = vmatprep.subr.bf16.mxu0 0
        %321 = vmatpush1.bf16.msra.mxu0 0
        %322 = vmatprep.subr.bf16.mxu0 0
        %323 = vmatpush1.bf16.msra.mxu0 0
        %324 = vmatprep.subr.bf16.mxu0 0
        %325 = vmatpush1.bf16.msra.mxu0 0
        %326 = vmatprep.subr.bf16.mxu0 0
        %327 = vmatpush1.bf16.msra.mxu0 0
        %328 = vmatprep.subr.bf16.mxu0 0
        %329 = vmatpush1.bf16.msra.mxu0 0
        %330 = vmatprep.subr.bf16.mxu0 0
        %331 = vmatpush1.bf16.msra.mxu0 0
        %332 = vmatprep.subr.bf16.mxu0 0
        %333 = vmatpush1.bf16.msra.mxu0 0
        %334 = vmatprep.subr.bf16.mxu0 0
        %335 = vmatpush1.bf16.msra.mxu0 0
        %336 = vmatprep.subr.bf16.mxu0 0
        %337 = vmatpush1.bf16.msra.mxu0 0
        %338 = vmatprep.subr.bf16.mxu0 0
        %339 = vmatpush1.bf16.msra.mxu0 0
        %340 = vmatprep.subr.bf16.mxu0 0
        %341 = vmatpush1.bf16.msra.mxu0 0
        %342 = vmatprep.mubr.bf16.mxu0 0
        %343 = vmatmul.mubr.bf16.gmra.mrb[0].mxu0 %v304
        %v344 = vpop.f32.mrb[0].mxu0
        %v345 = vadd.f32 0.0, %v344
        %v346 = vpop.f32.mrb[0].mxu0
        %v347 = vpop.f32.mrb[0].mxu0
        %v348 = vadd.f32 0.0, %v347
        %v349 = vpop.f32.mrb[0].mxu0
        %350 = vdwg.mxu0
        %v351 = vmax.f32 %v345, 0.0
        %v352 = vmax.f32 %v348, 0.0
        %v353 = vpack.c.bf16 %v352, %v351
        %v354 = vld [vmem:[#allocation7] sm:$0xf]
        %v355 = vld [vmem:[#allocation7 + $0x4] sm:$0xf]
        %v356 = vld [vmem:[#allocation7 + $0x8] sm:$0xf]
        %v357 = vld [vmem:[#allocation7 + $0xc] sm:$0xf]
        %v358 = vld [vmem:[#allocation7 + $0x10] sm:$0xf]
        %v359 = vld [vmem:[#allocation7 + $0x14] sm:$0xf]
        %v360 = vld [vmem:[#allocation7 + $0x18] sm:$0xf]
        %v361 = vld [vmem:[#allocation7 + $0x1c] sm:$0xf]
        %v370 = vunpack.c.l.b16 %v354
        %v371 = vunpack.c.l.b16 %v355
        %v372 = vunpack.c.l.b16 %v356
        %v373 = vunpack.c.l.b16 %v357
        %v374 = vunpack.c.l.b16 %v358
        %v375 = vunpack.c.l.b16 %v359
        %v376 = vunpack.c.l.b16 %v360
        %v377 = vunpack.c.l.b16 %v361
        %v378 = vpack.c.b16 %v371, %v370
        %v379 = vpack.c.b16 %v373, %v372
        %v380 = vpack.c.b16 %v375, %v374
        %v381 = vpack.c.b16 %v377, %v376
        %vm386 = vcmask 523264
        %v388 = vsel %vm386, %v353, 0
        %390 = vmatprep.subr.bf16.mxu0 0
        %391 = vmatpush1.bf16.msra.mxu0 %v378
        %392 = vmatprep.subr.bf16.mxu0 0
        %393 = vmatpush1.bf16.msra.mxu0 %v379
        %394 = vmatprep.subr.bf16.mxu0 0
        %395 = vmatpush1.bf16.msra.mxu0 %v380
        %396 = vmatprep.subr.bf16.mxu0 0
        %397 = vmatpush1.bf16.msra.mxu0 %v381
        %398 = vmatprep.subr.bf16.mxu0 0
        %399 = vmatpush1.bf16.msra.mxu0 0
        %400 = vmatprep.subr.bf16.mxu0 0
        %401 = vmatpush1.bf16.msra.mxu0 0
        %402 = vmatprep.subr.bf16.mxu0 0
        %403 = vmatpush1.bf16.msra.mxu0 0
        %404 = vmatprep.subr.bf16.mxu0 0
        %405 = vmatpush1.bf16.msra.mxu0 0
        %406 = vmatprep.subr.bf16.mxu0 0
        %407 = vmatpush1.bf16.msra.mxu0 0
        %408 = vmatprep.subr.bf16.mxu0 0
        %409 = vmatpush1.bf16.msra.mxu0 0
        %410 = vmatprep.subr.bf16.mxu0 0
        %411 = vmatpush1.bf16.msra.mxu0 0
        %412 = vmatprep.subr.bf16.mxu0 0
        %413 = vmatpush1.bf16.msra.mxu0 0
        %414 = vmatprep.subr.bf16.mxu0 0
        %415 = vmatpush1.bf16.msra.mxu0 0
        %416 = vmatprep.subr.bf16.mxu0 0
        %417 = vmatpush1.bf16.msra.mxu0 0
        %418 = vmatprep.subr.bf16.mxu0 0
        %419 = vmatpush1.bf16.msra.mxu0 0
        %420 = vmatprep.subr.bf16.mxu0 0
        %421 = vmatpush1.bf16.msra.mxu0 0
        %422 = vmatprep.mubr.bf16.mxu0 0
        %423 = vmatmul.mubr.bf16.gmra.mrb[0].mxu0 %v388
        %v424 = vpop.f32.mrb[0].mxu0
        %v425 = vadd.f32 0.0, %v424
        %v426 = vpop.f32.mrb[0].mxu0
        %v427 = vpop.f32.mrb[0].mxu0
        %v428 = vadd.f32 0.0, %v427
        %v429 = vpop.f32.mrb[0].mxu0
        %430 = vdwg.mxu0
        %v431 = vmax.f32 %v425, 0.0
        %v432 = vmax.f32 %v428, 0.0
        %v433 = vpack.c.bf16 %v432, %v431
        %v434 = vld [vmem:[#allocation8] sm:$0xff]
        %v435 = vld [vmem:[#allocation8 + $0x8] sm:$0xff]
        %v436 = vld [vmem:[#allocation8 + $0x10] sm:$0xff]
        %v437 = vld [vmem:[#allocation8 + $0x18] sm:$0xff]
        %v438 = vld [vmem:[#allocation8 + $0x20] sm:$0xff]
        %v439 = vld [vmem:[#allocation8 + $0x28] sm:$0xff]
        %v440 = vld [vmem:[#allocation8 + $0x30] sm:$0xff]
        %v441 = vld [vmem:[#allocation8 + $0x38] sm:$0xff]
        %v442 = vld [vmem:[#allocation8 + $0x40] sm:$0xff]
        %v443 = vld [vmem:[#allocation8 + $0x48] sm:$0xff]
        %v444 = vld [vmem:[#allocation8 + $0x50] sm:$0xff]
        %v445 = vld [vmem:[#allocation8 + $0x58] sm:$0xff]
        %v446 = vld [vmem:[#allocation8 + $0x60] sm:$0xff]
        %v447 = vld [vmem:[#allocation8 + $0x68] sm:$0xff]
        %v448 = vld [vmem:[#allocation8 + $0x70] sm:$0xff]
        %v449 = vld [vmem:[#allocation8 + $0x78] sm:$0xff]
        %v450 = vld [vmem:[#allocation8 + $0x80] sm:$0xff]
        %v451 = vld [vmem:[#allocation8 + $0x88] sm:$0xff]
        %v452 = vld [vmem:[#allocation8 + $0x90] sm:$0xff]
        %v453 = vld [vmem:[#allocation8 + $0x98] sm:$0xff]
        %v454 = vld [vmem:[#allocation8 + $0xa0] sm:$0xff]
        %v455 = vld [vmem:[#allocation8 + $0xa8] sm:$0xff]
        %v456 = vld [vmem:[#allocation8 + $0xb0] sm:$0xff]
        %v457 = vld [vmem:[#allocation8 + $0xb8] sm:$0xff]
        %v458 = vld [vmem:[#allocation8 + $0xc0] sm:$0xff]
        %v459 = vld [vmem:[#allocation8 + $0xc8] sm:$0xff]
        %v460 = vld [vmem:[#allocation8 + $0xd0] sm:$0xff]
        %v461 = vld [vmem:[#allocation8 + $0xd8] sm:$0xff]
        %v462 = vld [vmem:[#allocation8 + $0xe0] sm:$0xff]
        %v463 = vld [vmem:[#allocation8 + $0xe8] sm:$0xff]
        %v464 = vld [vmem:[#allocation8 + $0xf0] sm:$0xff]
        %v465 = vld [vmem:[#allocation8 + $0xf8] sm:$0xff]
        %v466 = vld [vmem:[#allocation8 + $0x100] sm:$0xff]
        %v467 = vld [vmem:[#allocation8 + $0x108] sm:$0xff]
        %v468 = vld [vmem:[#allocation8 + $0x110] sm:$0xff]
        %v469 = vld [vmem:[#allocation8 + $0x118] sm:$0xff]
        %v470 = vld [vmem:[#allocation8 + $0x120] sm:$0xff]
        %v471 = vld [vmem:[#allocation8 + $0x128] sm:$0xff]
        %v472 = vld [vmem:[#allocation8 + $0x130] sm:$0xff]
        %v473 = vld [vmem:[#allocation8 + $0x138] sm:$0xff]
        %v474 = vld [vmem:[#allocation8 + $0x140] sm:$0xff]
        %v475 = vld [vmem:[#allocation8 + $0x148] sm:$0xff]
        %v476 = vld [vmem:[#allocation8 + $0x150] sm:$0xff]
        %v477 = vld [vmem:[#allocation8 + $0x158] sm:$0xff]
        %v478 = vld [vmem:[#allocation8 + $0x160] sm:$0xff]
        %v479 = vld [vmem:[#allocation8 + $0x168] sm:$0xff]
        %v480 = vld [vmem:[#allocation8 + $0x170] sm:$0xff]
        %v481 = vld [vmem:[#allocation8 + $0x178] sm:$0xff]
        %v482 = vld [vmem:[#allocation8 + $0x180] sm:$0xff]
        %v483 = vld [vmem:[#allocation8 + $0x188] sm:$0xff]
        %v484 = vld [vmem:[#allocation8 + $0x190] sm:$0xff]
        %v485 = vld [vmem:[#allocation8 + $0x198] sm:$0xff]
        %v486 = vld [vmem:[#allocation8 + $0x1a0] sm:$0xff]
        %v487 = vld [vmem:[#allocation8 + $0x1a8] sm:$0xff]
        %v488 = vld [vmem:[#allocation8 + $0x1b0] sm:$0xff]
        %v489 = vld [vmem:[#allocation8 + $0x1b8] sm:$0xff]
        %v490 = vld [vmem:[#allocation8 + $0x1c0] sm:$0xff]
        %v491 = vld [vmem:[#allocation8 + $0x1c8] sm:$0xff]
        %v492 = vld [vmem:[#allocation8 + $0x1d0] sm:$0xff]
        %v493 = vld [vmem:[#allocation8 + $0x1d8] sm:$0xff]
        %v494 = vld [vmem:[#allocation8 + $0x1e0] sm:$0xff]
        %v495 = vld [vmem:[#allocation8 + $0x1e8] sm:$0xff]
        %v496 = vld [vmem:[#allocation8 + $0x1f0] sm:$0xff]
        %v497 = vld [vmem:[#allocation8 + $0x1f8] sm:$0xff]
        %v562 = vunpack.c.l.b16 %v434
        %v563 = vunpack.c.h.b16 %v434
        %v564 = vunpack.c.l.b16 %v435
        %v565 = vunpack.c.h.b16 %v435
        %v566 = vunpack.c.l.b16 %v436
        %v567 = vunpack.c.h.b16 %v436
        %v568 = vunpack.c.l.b16 %v437
        %v569 = vunpack.c.h.b16 %v437
        %v570 = vunpack.c.l.b16 %v438
        %v571 = vunpack.c.h.b16 %v438
        %v572 = vunpack.c.l.b16 %v439
        %v573 = vunpack.c.h.b16 %v439
        %v574 = vunpack.c.l.b16 %v440
        %v575 = vunpack.c.h.b16 %v440
        %v576 = vunpack.c.l.b16 %v441
        %v577 = vunpack.c.h.b16 %v441
        %v578 = vunpack.c.l.b16 %v442
        %v579 = vunpack.c.h.b16 %v442
        %v580 = vunpack.c.l.b16 %v443
        %v581 = vunpack.c.h.b16 %v443
        %v582 = vunpack.c.l.b16 %v444
        %v583 = vunpack.c.h.b16 %v444
        %v584 = vunpack.c.l.b16 %v445
        %v585 = vunpack.c.h.b16 %v445
        %v586 = vunpack.c.l.b16 %v446
        %v587 = vunpack.c.h.b16 %v446
        %v588 = vunpack.c.l.b16 %v447
        %v589 = vunpack.c.h.b16 %v447
        %v590 = vunpack.c.l.b16 %v448
        %v591 = vunpack.c.h.b16 %v448
        %v592 = vunpack.c.l.b16 %v449
        %v593 = vunpack.c.h.b16 %v449
        %v594 = vunpack.c.l.b16 %v450
        %v595 = vunpack.c.h.b16 %v450
        %v596 = vunpack.c.l.b16 %v451
        %v597 = vunpack.c.h.b16 %v451
        %v598 = vunpack.c.l.b16 %v452
        %v599 = vunpack.c.h.b16 %v452
        %v600 = vunpack.c.l.b16 %v453
        %v601 = vunpack.c.h.b16 %v453
        %v602 = vunpack.c.l.b16 %v454
        %v603 = vunpack.c.h.b16 %v454
        %v604 = vunpack.c.l.b16 %v455
        %v605 = vunpack.c.h.b16 %v455
        %v606 = vunpack.c.l.b16 %v456
        %v607 = vunpack.c.h.b16 %v456
        %v608 = vunpack.c.l.b16 %v457
        %v609 = vunpack.c.h.b16 %v457
        %v610 = vunpack.c.l.b16 %v458
        %v611 = vunpack.c.h.b16 %v458
        %v612 = vunpack.c.l.b16 %v459
        %v613 = vunpack.c.h.b16 %v459
        %v614 = vunpack.c.l.b16 %v460
        %v615 = vunpack.c.h.b16 %v460
        %v616 = vunpack.c.l.b16 %v461
        %v617 = vunpack.c.h.b16 %v461
        %v618 = vunpack.c.l.b16 %v462
        %v619 = vunpack.c.h.b16 %v462
        %v620 = vunpack.c.l.b16 %v463
        %v621 = vunpack.c.h.b16 %v463
        %v622 = vunpack.c.l.b16 %v464
        %v623 = vunpack.c.h.b16 %v464
        %v624 = vunpack.c.l.b16 %v465
        %v625 = vunpack.c.h.b16 %v465
        %v626 = vunpack.c.l.b16 %v466
        %v627 = vunpack.c.h.b16 %v466
        %v628 = vunpack.c.l.b16 %v467
        %v629 = vunpack.c.h.b16 %v467
        %v630 = vunpack.c.l.b16 %v468
        %v631 = vunpack.c.h.b16 %v468
        %v632 = vunpack.c.l.b16 %v469
        %v633 = vunpack.c.h.b16 %v469
        %v634 = vunpack.c.l.b16 %v470
        %v635 = vunpack.c.h.b16 %v470
        %v636 = vunpack.c.l.b16 %v471
        %v637 = vunpack.c.h.b16 %v471
        %v638 = vunpack.c.l.b16 %v472
        %v639 = vunpack.c.h.b16 %v472
        %v640 = vunpack.c.l.b16 %v473
        %v641 = vunpack.c.h.b16 %v473
        %v642 = vunpack.c.l.b16 %v474
        %v643 = vunpack.c.h.b16 %v474
        %v644 = vunpack.c.l.b16 %v475
        %v645 = vunpack.c.h.b16 %v475
        %v646 = vunpack.c.l.b16 %v476
        %v647 = vunpack.c.h.b16 %v476
        %v648 = vunpack.c.l.b16 %v477
        %v649 = vunpack.c.h.b16 %v477
        %v650 = vunpack.c.l.b16 %v478
        %v651 = vunpack.c.h.b16 %v478
        %v652 = vunpack.c.l.b16 %v479
        %v653 = vunpack.c.h.b16 %v479
        %v654 = vunpack.c.l.b16 %v480
        %v655 = vunpack.c.h.b16 %v480
        %v656 = vunpack.c.l.b16 %v481
        %v657 = vunpack.c.h.b16 %v481
        %v658 = vunpack.c.l.b16 %v482
        %v659 = vunpack.c.h.b16 %v482
        %v660 = vunpack.c.l.b16 %v483
        %v661 = vunpack.c.h.b16 %v483
        %v662 = vunpack.c.l.b16 %v484
        %v663 = vunpack.c.h.b16 %v484
        %v664 = vunpack.c.l.b16 %v485
        %v665 = vunpack.c.h.b16 %v485
        %v666 = vunpack.c.l.b16 %v486
        %v667 = vunpack.c.h.b16 %v486
        %v668 = vunpack.c.l.b16 %v487
        %v669 = vunpack.c.h.b16 %v487
        %v670 = vunpack.c.l.b16 %v488
        %v671 = vunpack.c.h.b16 %v488
        %v672 = vunpack.c.l.b16 %v489
        %v673 = vunpack.c.h.b16 %v489
        %v674 = vunpack.c.l.b16 %v490
        %v675 = vunpack.c.h.b16 %v490
        %v676 = vunpack.c.l.b16 %v491
        %v677 = vunpack.c.h.b16 %v491
        %v678 = vunpack.c.l.b16 %v492
        %v679 = vunpack.c.h.b16 %v492
        %v680 = vunpack.c.l.b16 %v493
        %v681 = vunpack.c.h.b16 %v493
        %v682 = vunpack.c.l.b16 %v494
        %v683 = vunpack.c.h.b16 %v494
        %v684 = vunpack.c.l.b16 %v495
        %v685 = vunpack.c.h.b16 %v495
        %v686 = vunpack.c.l.b16 %v496
        %v687 = vunpack.c.h.b16 %v496
        %v688 = vunpack.c.l.b16 %v497
        %v689 = vunpack.c.h.b16 %v497
        %v690 = vpack.c.b16 %v570, %v562
        %v691 = vpack.c.b16 %v571, %v563
        %v692 = vpack.c.b16 %v572, %v564
        %v693 = vpack.c.b16 %v573, %v565
        %v694 = vpack.c.b16 %v574, %v566
        %v695 = vpack.c.b16 %v575, %v567
        %v696 = vpack.c.b16 %v576, %v568
        %v697 = vpack.c.b16 %v577, %v569
        %v698 = vpack.c.b16 %v586, %v578
        %v699 = vpack.c.b16 %v587, %v579
        %v700 = vpack.c.b16 %v588, %v580
        %v701 = vpack.c.b16 %v589, %v581
        %v702 = vpack.c.b16 %v590, %v582
        %v703 = vpack.c.b16 %v591, %v583
        %v704 = vpack.c.b16 %v592, %v584
        %v705 = vpack.c.b16 %v593, %v585
        %v706 = vpack.c.b16 %v602, %v594
        %v707 = vpack.c.b16 %v603, %v595
        %v708 = vpack.c.b16 %v604, %v596
        %v709 = vpack.c.b16 %v605, %v597
        %v710 = vpack.c.b16 %v606, %v598
        %v711 = vpack.c.b16 %v607, %v599
        %v712 = vpack.c.b16 %v608, %v600
        %v713 = vpack.c.b16 %v609, %v601
        %v714 = vpack.c.b16 %v618, %v610
        %v715 = vpack.c.b16 %v619, %v611
        %v716 = vpack.c.b16 %v620, %v612
        %v717 = vpack.c.b16 %v621, %v613
        %v718 = vpack.c.b16 %v622, %v614
        %v719 = vpack.c.b16 %v623, %v615
        %v720 = vpack.c.b16 %v624, %v616
        %v721 = vpack.c.b16 %v625, %v617
        %v722 = vpack.c.b16 %v634, %v626
        %v723 = vpack.c.b16 %v635, %v627
        %v724 = vpack.c.b16 %v636, %v628
        %v725 = vpack.c.b16 %v637, %v629
        %v726 = vpack.c.b16 %v638, %v630
        %v727 = vpack.c.b16 %v639, %v631
        %v728 = vpack.c.b16 %v640, %v632
        %v729 = vpack.c.b16 %v641, %v633
        %v730 = vpack.c.b16 %v650, %v642
        %v731 = vpack.c.b16 %v651, %v643
        %v732 = vpack.c.b16 %v652, %v644
        %v733 = vpack.c.b16 %v653, %v645
        %v734 = vpack.c.b16 %v654, %v646
        %v735 = vpack.c.b16 %v655, %v647
        %v736 = vpack.c.b16 %v656, %v648
        %v737 = vpack.c.b16 %v657, %v649
        %v738 = vpack.c.b16 %v666, %v658
        %v739 = vpack.c.b16 %v667, %v659
        %v740 = vpack.c.b16 %v668, %v660
        %v741 = vpack.c.b16 %v669, %v661
        %v742 = vpack.c.b16 %v670, %v662
        %v743 = vpack.c.b16 %v671, %v663
        %v744 = vpack.c.b16 %v672, %v664
        %v745 = vpack.c.b16 %v673, %v665
        %v746 = vpack.c.b16 %v682, %v674
        %v747 = vpack.c.b16 %v683, %v675
        %v748 = vpack.c.b16 %v684, %v676
        %v749 = vpack.c.b16 %v685, %v677
        %v750 = vpack.c.b16 %v686, %v678
        %v751 = vpack.c.b16 %v687, %v679
        %v752 = vpack.c.b16 %v688, %v680
        %v753 = vpack.c.b16 %v689, %v681
        %818 = vmatprep.subr.bf16.mxu0 %v691
        %819 = vmatpush1.bf16.msra.mxu0 %v690
        %820 = vmatprep.subr.bf16.mxu0 %v699
        %821 = vmatpush1.bf16.msra.mxu0 %v698
        %822 = vmatprep.subr.bf16.mxu0 %v707
        %823 = vmatpush1.bf16.msra.mxu0 %v706
        %824 = vmatprep.subr.bf16.mxu0 %v715
        %825 = vmatpush1.bf16.msra.mxu0 %v714
        %826 = vmatprep.subr.bf16.mxu0 %v723
        %827 = vmatpush1.bf16.msra.mxu0 %v722
        %828 = vmatprep.subr.bf16.mxu0 %v731
        %829 = vmatpush1.bf16.msra.mxu0 %v730
        %830 = vmatprep.subr.bf16.mxu0 %v739
        %831 = vmatpush1.bf16.msra.mxu0 %v738
        %832 = vmatprep.subr.bf16.mxu0 %v747
        %833 = vmatpush1.bf16.msra.mxu0 %v746
        %834 = vmatprep.subr.bf16.mxu0 0
        %835 = vmatpush1.bf16.msra.mxu0 0
        %836 = vmatprep.subr.bf16.mxu0 0
        %837 = vmatpush1.bf16.msra.mxu0 0
        %838 = vmatprep.subr.bf16.mxu0 0
        %839 = vmatpush1.bf16.msra.mxu0 0
        %840 = vmatprep.subr.bf16.mxu0 0
        %841 = vmatpush1.bf16.msra.mxu0 0
        %842 = vmatprep.subr.bf16.mxu0 0
        %843 = vmatpush1.bf16.msra.mxu0 0
        %844 = vmatprep.subr.bf16.mxu0 0
        %845 = vmatpush1.bf16.msra.mxu0 0
        %846 = vmatprep.subr.bf16.mxu0 0
        %847 = vmatpush1.bf16.msra.mxu0 0
        %848 = vmatprep.subr.bf16.mxu0 0
        %849 = vmatpush1.bf16.msra.mxu0 0
        %850 = vmatprep.mubr.bf16.mxu0 0
        %851 = vmatmul.mubr.bf16.gmra.mrb[0].mxu0 %v433
        %v852 = vpop.f32.mrb[0].mxu0
        %v853 = vadd.f32 0.0, %v852
        %v854 = vpop.f32.mrb[0].mxu0
        %v855 = vadd.f32 0.0, %v854
        %v856 = vpop.f32.mrb[0].mxu0
        %v857 = vadd.f32 0.0, %v856
        %v858 = vpop.f32.mrb[0].mxu0
        %v859 = vadd.f32 0.0, %v858
        %860 = vdwg.mxu0
        %861 = vmatprep.subr.bf16.mxu0 %v693
        %862 = vmatpush1.bf16.msra.mxu0 %v692
        %863 = vmatprep.subr.bf16.mxu0 %v701
        %864 = vmatpush1.bf16.msra.mxu0 %v700
        %865 = vmatprep.subr.bf16.mxu0 %v709
        %866 = vmatpush1.bf16.msra.mxu0 %v708
        %867 = vmatprep.subr.bf16.mxu0 %v717
        %868 = vmatpush1.bf16.msra.mxu0 %v716
        %869 = vmatprep.subr.bf16.mxu0 %v725
        %870 = vmatpush1.bf16.msra.mxu0 %v724
        %871 = vmatprep.subr.bf16.mxu0 %v733
        %872 = vmatpush1.bf16.msra.mxu0 %v732
        %873 = vmatprep.subr.bf16.mxu0 %v741
        %874 = vmatpush1.bf16.msra.mxu0 %v740
        %875 = vmatprep.subr.bf16.mxu0 %v749
        %876 = vmatpush1.bf16.msra.mxu0 %v748
        %877 = vmatprep.subr.bf16.mxu0 0
        %878 = vmatpush1.bf16.msra.mxu0 0
        %879 = vmatprep.subr.bf16.mxu0 0
        %880 = vmatpush1.bf16.msra.mxu0 0
        %881 = vmatprep.subr.bf16.mxu0 0
        %882 = vmatpush1.bf16.msra.mxu0 0
        %883 = vmatprep.subr.bf16.mxu0 0
        %884 = vmatpush1.bf16.msra.mxu0 0
        %885 = vmatprep.subr.bf16.mxu0 0
        %886 = vmatpush1.bf16.msra.mxu0 0
        %887 = vmatprep.subr.bf16.mxu0 0
        %888 = vmatpush1.bf16.msra.mxu0 0
        %889 = vmatprep.subr.bf16.mxu0 0
        %890 = vmatpush1.bf16.msra.mxu0 0
        %891 = vmatprep.subr.bf16.mxu0 0
        %892 = vmatpush1.bf16.msra.mxu0 0
        %893 = vmatprep.mubr.bf16.mxu0 0
        %894 = vmatmul.mubr.bf16.gmra.mrb[0].mxu0 %v433
        %v895 = vpop.f32.mrb[0].mxu0
        %v896 = vadd.f32 0.0, %v895
        %v897 = vpop.f32.mrb[0].mxu0
        %v898 = vadd.f32 0.0, %v897
        %v899 = vpop.f32.mrb[0].mxu0
        %v900 = vadd.f32 0.0, %v899
        %v901 = vpop.f32.mrb[0].mxu0
        %v902 = vadd.f32 0.0, %v901
        %903 = vdwg.mxu0
        %904 = vmatprep.subr.bf16.mxu0 %v695
        %905 = vmatpush1.bf16.msra.mxu0 %v694
        %906 = vmatprep.subr.bf16.mxu0 %v703
        %907 = vmatpush1.bf16.msra.mxu0 %v702
        %908 = vmatprep.subr.bf16.mxu0 %v711
        %909 = vmatpush1.bf16.msra.mxu0 %v710
        %910 = vmatprep.subr.bf16.mxu0 %v719
        %911 = vmatpush1.bf16.msra.mxu0 %v718
        %912 = vmatprep.subr.bf16.mxu0 %v727
        %913 = vmatpush1.bf16.msra.mxu0 %v726
        %914 = vmatprep.subr.bf16.mxu0 %v735
        %915 = vmatpush1.bf16.msra.mxu0 %v734
        %916 = vmatprep.subr.bf16.mxu0 %v743
        %917 = vmatpush1.bf16.msra.mxu0 %v742
        %918 = vmatprep.subr.bf16.mxu0 %v751
        %919 = vmatpush1.bf16.msra.mxu0 %v750
        %920 = vmatprep.subr.bf16.mxu0 0
        %921 = vmatpush1.bf16.msra.mxu0 0
        %922 = vmatprep.subr.bf16.mxu0 0
        %923 = vmatpush1.bf16.msra.mxu0 0
        %924 = vmatprep.subr.bf16.mxu0 0
        %925 = vmatpush1.bf16.msra.mxu0 0
        %926 = vmatprep.subr.bf16.mxu0 0
        %927 = vmatpush1.bf16.msra.mxu0 0
        %928 = vmatprep.subr.bf16.mxu0 0
        %929 = vmatpush1.bf16.msra.mxu0 0
        %930 = vmatprep.subr.bf16.mxu0 0
        %931 = vmatpush1.bf16.msra.mxu0 0
        %932 = vmatprep.subr.bf16.mxu0 0
        %933 = vmatpush1.bf16.msra.mxu0 0
        %934 = vmatprep.subr.bf16.mxu0 0
        %935 = vmatpush1.bf16.msra.mxu0 0
        %936 = vmatprep.mubr.bf16.mxu0 0
        %937 = vmatmul.mubr.bf16.gmra.mrb[0].mxu0 %v433
        %v938 = vpop.f32.mrb[0].mxu0
        %v939 = vadd.f32 0.0, %v938
        %v940 = vpop.f32.mrb[0].mxu0
        %v941 = vadd.f32 0.0, %v940
        %v942 = vpop.f32.mrb[0].mxu0
        %v943 = vadd.f32 0.0, %v942
        %v944 = vpop.f32.mrb[0].mxu0
        %v945 = vadd.f32 0.0, %v944
        %946 = vdwg.mxu0
        %947 = vmatprep.subr.bf16.mxu0 %v697
        %948 = vmatpush1.bf16.msra.mxu0 %v696
        %949 = vmatprep.subr.bf16.mxu0 %v705
        %950 = vmatpush1.bf16.msra.mxu0 %v704
        %951 = vmatprep.subr.bf16.mxu0 %v713
        %952 = vmatpush1.bf16.msra.mxu0 %v712
        %953 = vmatprep.subr.bf16.mxu0 %v721
        %954 = vmatpush1.bf16.msra.mxu0 %v720
        %955 = vmatprep.subr.bf16.mxu0 %v729
        %956 = vmatpush1.bf16.msra.mxu0 %v728
        %957 = vmatprep.subr.bf16.mxu0 %v737
        %958 = vmatpush1.bf16.msra.mxu0 %v736
        %959 = vmatprep.subr.bf16.mxu0 %v745
        %960 = vmatpush1.bf16.msra.mxu0 %v744
        %961 = vmatprep.subr.bf16.mxu0 %v753
        %962 = vmatpush1.bf16.msra.mxu0 %v752
        %963 = vmatprep.subr.bf16.mxu0 0
        %964 = vmatpush1.bf16.msra.mxu0 0
        %965 = vmatprep.subr.bf16.mxu0 0
        %966 = vmatpush1.bf16.msra.mxu0 0
        %967 = vmatprep.subr.bf16.mxu0 0
        %968 = vmatpush1.bf16.msra.mxu0 0
        %969 = vmatprep.subr.bf16.mxu0 0
        %970 = vmatpush1.bf16.msra.mxu0 0
        %971 = vmatprep.subr.bf16.mxu0 0
        %972 = vmatpush1.bf16.msra.mxu0 0
        %973 = vmatprep.subr.bf16.mxu0 0
        %974 = vmatpush1.bf16.msra.mxu0 0
        %975 = vmatprep.subr.bf16.mxu0 0
        %976 = vmatpush1.bf16.msra.mxu0 0
        %977 = vmatprep.subr.bf16.mxu0 0
        %978 = vmatpush1.bf16.msra.mxu0 0
        %979 = vmatprep.mubr.bf16.mxu0 0
        %980 = vmatmul.mubr.bf16.gmra.mrb[0].mxu0 %v433
        %v981 = vpop.f32.mrb[0].mxu0
        %v982 = vadd.f32 0.0, %v981
        %v983 = vpop.f32.mrb[0].mxu0
        %v984 = vadd.f32 0.0, %v983
        %v985 = vpop.f32.mrb[0].mxu0
        %v986 = vadd.f32 0.0, %v985
        %v987 = vpop.f32.mrb[0].mxu0
        %v988 = vadd.f32 0.0, %v987
        %989 = vdwg.mxu0
        %v990 = vmax.f32 %v853, 0.0
        %v991 = vmax.f32 %v855, 0.0
        %v992 = vmax.f32 %v896, 0.0
        %v993 = vmax.f32 %v898, 0.0
        %v994 = vmax.f32 %v939, 0.0
        %v995 = vmax.f32 %v941, 0.0
        %v996 = vmax.f32 %v982, 0.0
        %v997 = vmax.f32 %v984, 0.0
        %v998 = vmax.f32 %v857, 0.0
        %v999 = vmax.f32 %v859, 0.0
        %v1000 = vmax.f32 %v900, 0.0
        %v1001 = vmax.f32 %v902, 0.0
        %v1002 = vmax.f32 %v943, 0.0
        %v1003 = vmax.f32 %v945, 0.0
        %v1004 = vmax.f32 %v986, 0.0
        %v1005 = vmax.f32 %v988, 0.0
        %v1006 = vld [vmem:[%s275] sm:$0xff]
        %v1007 = vmax.f32 %v990, %v998
        %v1008 = vrot.slane %v1007, 4
        %v1009 = vmax.f32 %v1007, %v1008
        %v1010 = vrot.slane %v1009, 2
        %v1011 = vmax.f32 %v1009, %v1010
        %v1012 = vrot.slane %v1011, 1
        %v1013 = vmax.f32 %v1011, %v1012
        %v1014 = vmax.f32 %v991, %v999
        %v1015 = vrot.slane %v1014, 4
        %v1016 = vmax.f32 %v1014, %v1015
        %v1017 = vrot.slane %v1016, 2
        %v1018 = vmax.f32 %v1016, %v1017
        %v1019 = vrot.slane %v1018, 1
        %v1020 = vmax.f32 %v1018, %v1019
        %v1021 = vmax.f32 %v992, %v1000
        %v1022 = vrot.slane %v1021, 4
        %v1023 = vmax.f32 %v1021, %v1022
        %v1024 = vrot.slane %v1023, 2
        %v1025 = vmax.f32 %v1023, %v1024
        %v1026 = vrot.slane %v1025, 1
        %v1027 = vmax.f32 %v1025, %v1026
        %v1028 = vmax.f32 %v993, %v1001
        %v1029 = vrot.slane %v1028, 4
        %v1030 = vmax.f32 %v1028, %v1029
        %v1031 = vrot.slane %v1030, 2
        %v1032 = vmax.f32 %v1030, %v1031
        %v1033 = vrot.slane %v1032, 1
        %v1034 = vmax.f32 %v1032, %v1033
        %v1035 = vmax.f32 %v994, %v1002
        %v1036 = vrot.slane %v1035, 4
        %v1037 = vmax.f32 %v1035, %v1036
        %v1038 = vrot.slane %v1037, 2
        %v1039 = vmax.f32 %v1037, %v1038
        %v1040 = vrot.slane %v1039, 1
        %v1041 = vmax.f32 %v1039, %v1040
        %v1042 = vmax.f32 %v995, %v1003
        %v1043 = vrot.slane %v1042, 4
        %v1044 = vmax.f32 %v1042, %v1043
        %v1045 = vrot.slane %v1044, 2
        %v1046 = vmax.f32 %v1044, %v1045
        %v1047 = vrot.slane %v1046, 1
        %v1048 = vmax.f32 %v1046, %v1047
        %v1049 = vmax.f32 %v996, %v1004
        %v1050 = vrot.slane %v1049, 4
        %v1051 = vmax.f32 %v1049, %v1050
        %v1052 = vrot.slane %v1051, 2
        %v1053 = vmax.f32 %v1051, %v1052
        %v1054 = vrot.slane %v1053, 1
        %v1055 = vmax.f32 %v1053, %v1054
        %v1056 = vmax.f32 %v997, %v1005
        %v1057 = vrot.slane %v1056, 4
        %v1058 = vmax.f32 %v1056, %v1057
        %v1059 = vrot.slane %v1058, 2
        %v1060 = vmax.f32 %v1058, %v1059
        %v1061 = vrot.slane %v1060, 1
        %v1062 = vmax.f32 %v1060, %v1061
        %v1071 = vcombine.low %v1013, %v1020
        %v1072 = vcombine.low %v1027, %v1034
        %v1073 = vcombine.low %v1041, %v1048
        %v1074 = vcombine.low %v1055, %v1062
        %v1076 = vunpack.c.l.s4 1966171168
        %v1077 = vunpack.c.0.s8 %v1076
        %v1078 = vlaneseq
        %v1079 = vshrl.u32 %v1078, 7
        %v1080 = vsub.s32 %v1077, %v1079
        %v1081 = vrot.slane %v1071, %v1080
        %v1083 = vunpack.c.l.s4 1966171168
        %v1084 = vunpack.c.0.s8 %v1083
        %v1085 = vlaneseq
        %v1086 = vshrl.u32 %v1085, 7
        %v1087 = vsub.s32 %v1084, %v1086
        %v1088 = vrot.slane %v1072, %v1087
        %v1090 = vunpack.c.l.s4 1966171168
        %v1091 = vunpack.c.0.s8 %v1090
        %v1092 = vlaneseq
        %v1093 = vshrl.u32 %v1092, 7
        %v1094 = vsub.s32 %v1091, %v1093
        %v1095 = vrot.slane %v1073, %v1094
        %v1097 = vunpack.c.l.s4 1966171168
        %v1098 = vunpack.c.0.s8 %v1097
        %v1099 = vlaneseq
        %v1100 = vshrl.u32 %v1099, 7
        %v1101 = vsub.s32 %v1098, %v1100
        %v1102 = vrot.slane %v1074, %v1101
        %v1103 = vcombine.low %v1081, %v1088
        %v1104 = vcombine.low %v1095, %v1102
        %v1106 = vunpack.c.l.s4 1966171168
        %v1107 = vunpack.c.0.s8 %v1106
        %v1108 = vlaneseq
        %v1109 = vshrl.u32 %v1108, 7
        %v1110 = vsub.s32 %v1107, %v1109
        %v1111 = vrot.slane %v1103, %v1110
        %v1113 = vunpack.c.l.s4 1966171168
        %v1114 = vunpack.c.0.s8 %v1113
        %v1115 = vlaneseq
        %v1116 = vshrl.u32 %v1115, 7
        %v1117 = vsub.s32 %v1114, %v1116
        %v1118 = vrot.slane %v1104, %v1117
        %v1119 = vcombine.low %v1111, %v1118
        %v1121 = vmax.f32 %v1006, %v1119
        %1122 = vst [vmem:[%s275] sm:$0xff] %v1121
        %s1123 = sand.u32 %s134, 1
        %s1124 = scalar_lea.sflag [#allocation4], %s1123
        %s1125 = sand.u32 %s134, 1
        %s1126 = smul.addr %s1125, 8
        %s1127 = scalar_lea.vmem [#allocation10], %s1126
        // Predicated region
        $region57: #{tpu_custom_call.1} parent=35 // pred_check
          %p1128 = pneg %p144
        $region58: #{tpu_custom_call.1} parent=35 // pred_check_branch
          %1130 = sbr.rel (%p1128) target = $region60
        $region59: #{tpu_custom_call.1} parent=35 // pred_region
          %s1132 = ssub.s32 128, 128
          %1133 = vsyncadd %s1124, %s1132
          %s1134 = smul.addr %s27, 8
          %s1135 = smul.addr %s1134, 16
          %s1136 = scalar_lea.hbm %s4, %s1135
          %s1138 = sshll.u32 %s1127, 4
          %s1139 = int_to_ptr.vmem [resolvable:$true] %s1138
          %1141 = dma.vmem_to_hbm [thread:$0]  %s1139, 128, %s1136, %s1124
        $region60: #{tpu_custom_call.1} parent=35 // pred_fallthru
          _
      $region36: #{tpu_custom_call.1} parent=5 // pred_fallthru
        _
      %p1142 = scmp.le.s32.totalorder 2, %s18
      // Predicated region
      $region61: #{tpu_custom_call.1} parent=5 // pred_check
        %p1143 = pneg %p1142
      $region62: #{tpu_custom_call.1} parent=5 // pred_check_branch
        %1145 = sbr.rel (%p1143) target = $region64
      $region63: #{tpu_custom_call.1} parent=5 // pred_region
        %s1146 = ssub.s32 %s18, 2
        // Predicated region
        $region65: #{tpu_custom_call.1} parent=63 // pred_check
          %p1147 = pneg %p150
        $region66: #{tpu_custom_call.1} parent=63 // pred_check_branch
          %1149 = sbr.rel (%p1147) target = $region68
        $region67: #{tpu_custom_call.1} parent=63 // pred_region
          %s1150 = sand.u32 %s135, 1
          %s1151 = scalar_lea.sflag [#allocation4], %s1150
          %s1152 = sand.u32 %s135, 1
          %s1153 = smul.addr %s1152, 8
          %s1154 = scalar_lea.vmem [#allocation10], %s1153
          %1155 = dma.done %s1151, 128
        $region68: #{tpu_custom_call.1} parent=63 // pred_fallthru
          _
      $region64: #{tpu_custom_call.1} parent=5 // pred_fallthru
        _
    $region6: #{tpu_custom_call.1} parent=1 // loop_footer
      %s22 = sadd.s32 1, %s18
    $region7: #{tpu_custom_call.1} parent=1 // loop_footer_branch
      %17 = sbr.rel target = $region3
    $region8: #{tpu_custom_call.1} parent=1 // loop_exit
      _
    %1156 = vsyncpa [#allocation3], 1
    %s1157 = scalar_lea.sflag [#allocation3], 1
    %1158 = vsyncpa %s1157, 1
    %1159 = vsyncpa [#allocation6], 1
    %1160 = vsyncpa [#allocation9], 1
    %1161 = vsyncpa [#allocation4], 1
    %s1162 = scalar_lea.sflag [#allocation4], 1
    %1163 = vsyncpa %s1162, 1

</llo_original>
